<compile_context>
chip_gen: v6e
topology: v6e:2x2x1
jax: 0.10.0
libtpu: 0.0.40
codegen_flags: <defaults>
</compile_context>

<pallas_src>
import numpy as np
import jax
import jax.numpy as jnp
from jax.experimental import pallas as pl
from jax.experimental.pallas import tpu as pltpu

LN_EPS = 1e-5  # PyTorch nn.LayerNorm default


def _layernorm_kernel(x_ref, gamma_ref, beta_ref, o_ref):
    # x_ref: (TB, D) tile; gamma/beta: (1, D), resident across all grid steps.
    x = x_ref[...].astype(jnp.float32)
    d_inv = jnp.float32(1.0 / x.shape[-1])
    # One-pass statistics: both reductions over the same traversal of x.
    s1 = jnp.sum(x, axis=-1, keepdims=True)
    s2 = jnp.sum(x * x, axis=-1, keepdims=True)
    mean = s1 * d_inv
    var = jnp.maximum(s2 * d_inv - mean * mean, 0.0)   # biased var, clamp cancellation
    inv = jax.lax.rsqrt(var + LN_EPS)                  # EUP slot (free-ish)
    g = gamma_ref[...].astype(jnp.float32)
    b = beta_ref[...].astype(jnp.float32)
    # Centered slab formed exactly once, fused into the lane-dense full-tile store.
    o_ref[...] = ((x - mean) * (inv * g) + b).astype(o_ref.dtype)


def _pick_row_tile(B, D, itemsize, target_tile_bytes=4 << 20):
    """Row tile: ~4 MiB/buffer, multiple of 8 sublanes, minimal last-step padding."""
    padded_B = ((B + 7) // 8) * 8
    row_bytes = max(1, D * itemsize)
    max_rows = max(8, (target_tile_bytes // row_bytes) // 8 * 8)
    max_rows = min(max_rows, padded_B)
    # v7x megacore: prefer >= 2 grid steps when the batch is big enough to split.
    if padded_B >= 16 and max_rows >= padded_B:
        max_rows = max(8, ((padded_B // 2 + 7) // 8) * 8)
    # Among multiple-of-8 candidates near max_rows, pick the one minimizing the
    # last grid step's padding (ragged tile => masked stores + wasted work);
    # prefer the larger tile on ties.
    lo = max(8, ((max_rows // 2) // 8) * 8)
    best_tb, best_key = max_rows, None
    for tb in range(max_rows, lo - 1, -8):
        steps = -(-B // tb)
        pad = steps * tb - B
        key = (pad, -tb)
        if best_key is None or key < best_key:
            best_tb, best_key = tb, key
    return best_tb


def patch_embed_direct(x_nchw, gamma, beta):
    """Equivalent of PatchEmbedDirect.forward: x.view(B, -1) -> LayerNorm(D)."""
    B = x_nchw.shape[0]
    x2d = x_nchw.reshape(B, -1)                        # glue: flatten (view)
    D = x2d.shape[-1]
    assert gamma.shape == (D,) and beta.shape == (D,)
    assert D % 128 == 0, "embed_dim must be a multiple of 128 for lane-dense tiles"

    g2d = gamma.reshape(1, D)
    b2d = beta.reshape(1, D)

    itemsize = np.dtype(x2d.dtype).itemsize
    param_itemsize = np.dtype(gamma.dtype).itemsize
    tb = _pick_row_tile(B, D, itemsize)
    grid = (pl.cdiv(B, tb),)

    # 2x double-buffered input + 2x double-buffered output + params + slack.
    tile_bytes = tb * D * itemsize
    vmem_needed = 4 * tile_bytes + 4 * D * param_itemsize + (2 << 20)
    vmem_limit = int(min(64 << 20, max(vmem_needed, 32 << 20)))

    cost = pl.CostEstimate(
        flops=8 * B * D,                               # sums, square, normalize, affine
        transcendentals=B,                             # one rsqrt per row
        bytes_accessed=2 * B * D * itemsize + 2 * D * param_itemsize,
    )

    out = pl.pallas_call(
        _layernorm_kernel,
        out_shape=jax.ShapeDtypeStruct((B, D), x2d.dtype),
        grid_spec=pltpu.PrefetchScalarGridSpec(
            num_scalar_prefetch=0,
            grid=grid,
            in_specs=[
                pl.BlockSpec((tb, D), lambda i: (i, 0)),   # row-tiled input
                pl.BlockSpec((1, D), lambda i: (0, 0)),    # gamma: VMEM-resident
                pl.BlockSpec((1, D), lambda i: (0, 0)),    # beta:  VMEM-resident
            ],
            out_specs=pl.BlockSpec((tb, D), lambda i: (i, 0)),  # row-tiled output
        ),
        compiler_params=pltpu.CompilerParams(
            dimension_semantics=("parallel",),         # 2-TC sharding on v7x
            vmem_limit_bytes=vmem_limit,               # covers 4 MiB tiles on v5e
        ),
        cost_estimate=cost,
    )(x2d, g2d, b2d)
    return out


if __name__ == "__main__":
    # embed_dim must equal C*H*W for the flattened LayerNorm to apply.
    B, C, H, W = 2, 4, 16, 16
    embed_dim = C * H * W  # 1024

    key = jax.random.PRNGKey(0)
    x = jax.random.normal(key, (B, C, H, W), dtype=jnp.float32)

    # nn.LayerNorm(embed_dim) default init: weight=1, bias=0 (deterministic).
    gamma = jnp.ones((embed_dim,), dtype=jnp.float32)
    beta = jnp.zeros((embed_dim,), dtype=jnp.float32)

    out = patch_embed_direct(x, gamma, beta)
    out = jax.block_until_ready(out)

    # Reference check in plain JAX (two-pass, same math as torch.nn.LayerNorm).
    x2d = x.reshape(B, -1)
    mu = jnp.mean(x2d, axis=-1, keepdims=True)
    var = jnp.mean((x2d - mu) ** 2, axis=-1, keepdims=True)
    ref = (x2d - mu) / jnp.sqrt(var + LN_EPS) * gamma + beta

    assert out.shape == (B, embed_dim)
    assert jnp.allclose(out, ref, atol=1e-4, rtol=1e-5)
    print("KERNEL_OK")
</pallas_src>

<mosaic_0001>
module attributes {stable_mosaic.version = 11 : i64} {
  func.func @_layernorm_kernel(%arg0: i32, %arg1: memref<8x1024xf32, #tpu.memory_space<vmem>>, %arg2: memref<1x1024xf32, #tpu.memory_space<vmem>>, %arg3: memref<1x1024xf32, #tpu.memory_space<vmem>>, %arg4: memref<8x1024xf32, #tpu.memory_space<vmem>>) attributes {dimension_semantics = [#tpu.dimension_semantics<parallel>], iteration_bounds = array<i64: 1>, scalar_prefetch = 0 : i64, scratch_operands = 0 : i64, tpu.core_type = #tpu.core_type<tc>, window_params = [{transform_indices = @transform_0, window_bounds = array<i64: 8, 1024>}, {pipeline_mode = #tpu.pipeline_mode<synchronous>, transform_indices = @transform_1, window_bounds = array<i64: 1, 1024>}, {pipeline_mode = #tpu.pipeline_mode<synchronous>, transform_indices = @transform_2, window_bounds = array<i64: 1, 1024>}, {transform_indices = @transform_3, window_bounds = array<i64: 8, 1024>}]} {
    %c0 = arith.constant 0 : index
    %c0_0 = arith.constant 0 : index
    %0 = vector.load %arg1[%c0, %c0_0] : memref<8x1024xf32, #tpu.memory_space<vmem>>, vector<8x1024xf32>
    %cst = arith.constant dense<0.000000e+00> : vector<8xf32>
    %1 = vector.multi_reduction <add>, %0, %cst [1] : vector<8x1024xf32> to vector<8xf32>
    %2 = vector.shape_cast %1 : vector<8xf32> to vector<8x1xf32>
    %3 = arith.mulf %0, %0 : vector<8x1024xf32>
    %cst_1 = arith.constant dense<0.000000e+00> : vector<8xf32>
    %4 = vector.multi_reduction <add>, %3, %cst_1 [1] : vector<8x1024xf32> to vector<8xf32>
    %5 = vector.shape_cast %4 : vector<8xf32> to vector<8x1xf32>
    %cst_2 = arith.constant 9.765625E-4 : f32
    %6 = vector.broadcast %cst_2 : f32 to vector<8x1xf32>
    %7 = arith.mulf %2, %6 : vector<8x1xf32>
    %cst_3 = arith.constant 9.765625E-4 : f32
    %8 = vector.broadcast %cst_3 : f32 to vector<8x1xf32>
    %9 = arith.mulf %5, %8 : vector<8x1xf32>
    %10 = arith.mulf %7, %7 : vector<8x1xf32>
    %11 = arith.subf %9, %10 : vector<8x1xf32>
    %cst_4 = arith.constant 0.000000e+00 : f32
    %12 = vector.broadcast %cst_4 : f32 to vector<8x1xf32>
    %13 = arith.maximumf %11, %12 : vector<8x1xf32>
    %cst_5 = arith.constant 9.99999974E-6 : f32
    %14 = vector.broadcast %cst_5 : f32 to vector<8x1xf32>
    %15 = arith.addf %13, %14 : vector<8x1xf32>
    %16 = math.rsqrt %15 : vector<8x1xf32>
    %c0_6 = arith.constant 0 : index
    %c0_7 = arith.constant 0 : index
    %17 = vector.load %arg2[%c0_6, %c0_7] : memref<1x1024xf32, #tpu.memory_space<vmem>>, vector<1x1024xf32>
    %c0_8 = arith.constant 0 : index
    %c0_9 = arith.constant 0 : index
    %18 = vector.load %arg3[%c0_8, %c0_9] : memref<1x1024xf32, #tpu.memory_space<vmem>>, vector<1x1024xf32>
    %19 = vector.broadcast %7 : vector<8x1xf32> to vector<8x1024xf32>
    %20 = arith.subf %0, %19 : vector<8x1024xf32>
    %21 = vector.broadcast %16 : vector<8x1xf32> to vector<8x1024xf32>
    %22 = vector.broadcast %17 : vector<1x1024xf32> to vector<8x1024xf32>
    %23 = arith.mulf %21, %22 : vector<8x1024xf32>
    %24 = arith.mulf %20, %23 : vector<8x1024xf32>
    %25 = vector.broadcast %18 : vector<1x1024xf32> to vector<8x1024xf32>
    %26 = arith.addf %24, %25 : vector<8x1024xf32>
    %c0_10 = arith.constant 0 : index
    %c0_11 = arith.constant 0 : index
    %27 = vector.load %arg4[%c0_10, %c0_11] : memref<8x1024xf32, #tpu.memory_space<vmem>>, vector<8x1024xf32>
    tpu.vector_store %arg4[%c0_10, %c0_11], %26 {strides = array<i32>} : memref<8x1024xf32, #tpu.memory_space<vmem>>, vector<8x1024xf32>,
    return
  }
  func.func @transform_0(%arg0: i32) -> (i32, i32) {
    %c0_i32 = arith.constant 0 : i32
    %c0_i32_0 = arith.constant 0 : i32
    return %arg0, %c0_i32 : i32, i32
  }
  func.func @transform_1(%arg0: i32) -> (i32, i32) {
    %c0_i32 = arith.constant 0 : i32
    %c0_i32_0 = arith.constant 0 : i32
    %c0_i32_1 = arith.constant 0 : i32
    return %c0_i32, %c0_i32_0 : i32, i32
  }
  func.func @transform_2(%arg0: i32) -> (i32, i32) {
    %c0_i32 = arith.constant 0 : i32
    %c0_i32_0 = arith.constant 0 : i32
    %c0_i32_1 = arith.constant 0 : i32
    return %c0_i32, %c0_i32_0 : i32, i32
  }
  func.func @transform_3(%arg0: i32) -> (i32, i32) {
    %c0_i32 = arith.constant 0 : i32
    %c0_i32_0 = arith.constant 0 : i32
    return %arg0, %c0_i32 : i32, i32
  }
}

</mosaic_0001>

<llo_original>
// kernel: tpu_custom_call.1
$region0: #{tpu_custom_call.1}
  #allocation0 [shape = 'u32[]', space=smem, size = 0x4, offset = 0x4, fixed_abs, tag = 'smem constant byte address 0x4 - core index']
  #allocation1 [shape = 'u32[144,128]{1,0:T(1,128)}', space=vmem, size = 0x12000, scoped, tag = 'internal scratch']
  %s0 = inlined_call_operand.hbm [shape: f32[2,1024], index: 0, kind: input, shape index: {}]
  %s1 = inlined_call_operand.hbm [shape: f32[1,1024], index: 1, kind: input, shape index: {}]
  %s2 = inlined_call_operand.hbm [shape: f32[1,1024], index: 2, kind: input, shape index: {}]
  %s3 = inlined_call_operand.hbm [shape: f32[2,1024], index: 3, kind: output, shape index: {}]
  %s4 = sld [smem:[#allocation0]]
  $region34: #{tpu_custom_call.1} parent=0
    _
  %s6 = ssub.s32 1, %s4
  %s7 = scalar_select 0, %s6, %s4
  $region1: #{tpu_custom_call.1} parent=0
    #allocation2 [shape = 'u8[32768]{0}', space=vmem, size = 0x8000, scoped, tag = 'input window, operand 0, single buffered']
    #allocation3 [shape = 's32[1]{0}', space=sflag, size = 0x4, scoped, tag = 'scoped memory for tpu_custom_call.1']
    #allocation4 [shape = 's32[1]{0}', space=sflag, size = 0x4, scoped, tag = 'scoped memory for tpu_custom_call.1']
    #allocation5 [shape = 'u8[4096]{0}', space=vmem, size = 0x1000, scoped, tag = 'input window, operand 1, single buffered']
    #allocation6 [shape = 's32[1]{0}', space=sflag, size = 0x4, scoped, tag = 'scoped memory for tpu_custom_call.1']
    #allocation7 [shape = 'u8[4096]{0}', space=vmem, size = 0x1000, scoped, tag = 'input window, operand 2, single buffered']
    #allocation8 [shape = 'u8[32768]{0}', space=vmem, size = 0x8000, scoped, tag = 'output window, operand 0, single buffered']
    %8 = vsyncpa [#allocation3], 0
    %9 = vsyncpa [#allocation6], 0
    %10 = vsyncpa [#allocation4], 0
    // Predicated region
    $region2: #{tpu_custom_call.1} parent=1 // pred_check
      _
    $region3: #{tpu_custom_call.1} parent=1 // pred_check_branch
      %12 = sbr.rel (0) target = $region5
    $region4: #{tpu_custom_call.1} parent=1 // pred_region
      %s14 = ssub.s32 1024, 256
      %15 = vsyncadd [#allocation3], %s14
      %s16 = sshll.u32 [#allocation2], 4
      %s17 = int_to_ptr.vmem [resolvable:$true] %s16
      %22 = dma.hbm_to_vmem [thread:$0]  %s0, 256, %s17, [#allocation3], 256, 256, 16
    $region5: #{tpu_custom_call.1} parent=1 // pred_fallthru
      _
    // Predicated region
    $region6: #{tpu_custom_call.1} parent=1 // pred_check
      _
    $region7: #{tpu_custom_call.1} parent=1 // pred_check_branch
      %24 = sbr.rel (0) target = $region9
    $region8: #{tpu_custom_call.1} parent=1 // pred_region
      %s26 = ssub.s32 128, 128
      %27 = vsyncadd [#allocation6], %s26
      %s29 = sshll.u32 [#allocation5], 4
      %s30 = int_to_ptr.vmem [resolvable:$true] %s29
      %32 = dma.hbm_to_vmem [thread:$0]  %s1, 128, %s30, [#allocation6]
    $region9: #{tpu_custom_call.1} parent=1 // pred_fallthru
      _
    // Predicated region
    $region10: #{tpu_custom_call.1} parent=1 // pred_check
      _
    $region11: #{tpu_custom_call.1} parent=1 // pred_check_branch
      %34 = sbr.rel (0) target = $region13
    $region12: #{tpu_custom_call.1} parent=1 // pred_region
      %s36 = ssub.s32 128, 128
      %37 = vsyncadd [#allocation6], %s36
      %s39 = sshll.u32 [#allocation7], 4
      %s40 = int_to_ptr.vmem [resolvable:$true] %s39
      %42 = dma.hbm_to_vmem [thread:$0]  %s2, 128, %s40, [#allocation6]
    $region13: #{tpu_custom_call.1} parent=1 // pred_fallthru
      _
    // Predicated region
    $region14: #{tpu_custom_call.1} parent=1 // pred_check
      _
    $region15: #{tpu_custom_call.1} parent=1 // pred_check_branch
      %44 = sbr.rel (0) target = $region17
    $region16: #{tpu_custom_call.1} parent=1 // pred_region
      %45 = dma.done [#allocation3], 1024
    $region17: #{tpu_custom_call.1} parent=1 // pred_fallthru
      _
    // Predicated region
    $region18: #{tpu_custom_call.1} parent=1 // pred_check
      _
    $region19: #{tpu_custom_call.1} parent=1 // pred_check_branch
      %47 = sbr.rel (0) target = $region21
    $region20: #{tpu_custom_call.1} parent=1 // pred_region
      %48 = dma.done [#allocation6], 128
    $region21: #{tpu_custom_call.1} parent=1 // pred_fallthru
      _
    // Predicated region
    $region22: #{tpu_custom_call.1} parent=1 // pred_check
      _
    $region23: #{tpu_custom_call.1} parent=1 // pred_check_branch
      %50 = sbr.rel (0) target = $region25
    $region24: #{tpu_custom_call.1} parent=1 // pred_region
      %51 = dma.done [#allocation6], 128
    $region25: #{tpu_custom_call.1} parent=1 // pred_fallthru
      _
    %v52 = vld [vmem:[#allocation2] sm:$0xff]
    %v53 = vld [vmem:[#allocation2 + $0x8] sm:$0xff]
    %v54 = vld [vmem:[#allocation2 + $0x10] sm:$0xff]
    %v55 = vld [vmem:[#allocation2 + $0x18] sm:$0xff]
    %v56 = vld [vmem:[#allocation2 + $0x20] sm:$0xff]
    %v57 = vld [vmem:[#allocation2 + $0x28] sm:$0xff]
    %v58 = vld [vmem:[#allocation2 + $0x30] sm:$0xff]
    %v59 = vld [vmem:[#allocation2 + $0x38] sm:$0xff]
    %v68 = vcombine.low %v52, %v54
    %v69 = vcombine.high %v52, %v54
    %v70 = vcombine.low %v56, %v58
    %v71 = vcombine.high %v56, %v58
    %v73 = vunpack.c.l.s4 1983009808
    %v74 = vunpack.c.0.s8 %v73
    %v75 = vlaneseq
    %v76 = vshrl.u32 %v75, 7
    %v77 = vsub.s32 %v74, %v76
    %v78 = vrot.slane %v68, %v77
    %v80 = vunpack.c.l.s4 1983009808
    %v81 = vunpack.c.0.s8 %v80
    %v82 = vlaneseq
    %v83 = vshrl.u32 %v82, 7
    %v84 = vsub.s32 %v81, %v83
    %v85 = vrot.slane %v69, %v84
    %v87 = vunpack.c.l.s4 1983009808
    %v88 = vunpack.c.0.s8 %v87
    %v89 = vlaneseq
    %v90 = vshrl.u32 %v89, 7
    %v91 = vsub.s32 %v88, %v90
    %v92 = vrot.slane %v70, %v91
    %v94 = vunpack.c.l.s4 1983009808
    %v95 = vunpack.c.0.s8 %v94
    %v96 = vlaneseq
    %v97 = vshrl.u32 %v96, 7
    %v98 = vsub.s32 %v95, %v97
    %v99 = vrot.slane %v71, %v98
    %v100 = vcombine.low %v78, %v92
    %v101 = vcombine.high %v78, %v92
    %v102 = vcombine.low %v85, %v99
    %v103 = vcombine.high %v85, %v99
    %v104 = vcombine.low %v53, %v55
    %v105 = vcombine.high %v53, %v55
    %v106 = vcombine.low %v57, %v59
    %v107 = vcombine.high %v57, %v59
    %v109 = vunpack.c.l.s4 1983009808
    %v110 = vunpack.c.0.s8 %v109
    %v111 = vlaneseq
    %v112 = vshrl.u32 %v111, 7
    %v113 = vsub.s32 %v110, %v112
    %v114 = vrot.slane %v104, %v113
    %v116 = vunpack.c.l.s4 1983009808
    %v117 = vunpack.c.0.s8 %v116
    %v118 = vlaneseq
    %v119 = vshrl.u32 %v118, 7
    %v120 = vsub.s32 %v117, %v119
    %v121 = vrot.slane %v105, %v120
    %v123 = vunpack.c.l.s4 1983009808
    %v124 = vunpack.c.0.s8 %v123
    %v125 = vlaneseq
    %v126 = vshrl.u32 %v125, 7
    %v127 = vsub.s32 %v124, %v126
    %v128 = vrot.slane %v106, %v127
    %v130 = vunpack.c.l.s4 1983009808
    %v131 = vunpack.c.0.s8 %v130
    %v132 = vlaneseq
    %v133 = vshrl.u32 %v132, 7
    %v134 = vsub.s32 %v131, %v133
    %v135 = vrot.slane %v107, %v134
    %v136 = vcombine.low %v114, %v128
    %v137 = vcombine.high %v114, %v128
    %v138 = vcombine.low %v121, %v135
    %v139 = vcombine.high %v121, %v135
    %v148 = vadd.f32 %v100, %v101
    %v149 = vadd.f32 %v148, %v102
    %v150 = vadd.f32 %v149, %v103
    %v151 = vadd.f32 %v150, %v136
    %v152 = vadd.f32 %v151, %v137
    %v153 = vadd.f32 %v152, %v138
    %v154 = vadd.f32 %v153, %v139
    %155 = vadd.xlane.f32.xlu0 %v154
    %v156 = vpop.xlane.xlu0 %155
    %v157 = vmul.f32 %v52, %v52
    %v158 = vmul.f32 %v53, %v53
    %v159 = vmul.f32 %v54, %v54
    %v160 = vmul.f32 %v55, %v55
    %v161 = vmul.f32 %v56, %v56
    %v162 = vmul.f32 %v57, %v57
    %v163 = vmul.f32 %v58, %v58
    %v164 = vmul.f32 %v59, %v59
    %v173 = vcombine.low %v157, %v159
    %v174 = vcombine.high %v157, %v159
    %v175 = vcombine.low %v161, %v163
    %v176 = vcombine.high %v161, %v163
    %v178 = vunpack.c.l.s4 1983009808
    %v179 = vunpack.c.0.s8 %v178
    %v180 = vlaneseq
    %v181 = vshrl.u32 %v180, 7
    %v182 = vsub.s32 %v179, %v181
    %v183 = vrot.slane %v173, %v182
    %v185 = vunpack.c.l.s4 1983009808
    %v186 = vunpack.c.0.s8 %v185
    %v187 = vlaneseq
    %v188 = vshrl.u32 %v187, 7
    %v189 = vsub.s32 %v186, %v188
    %v190 = vrot.slane %v174, %v189
    %v192 = vunpack.c.l.s4 1983009808
    %v193 = vunpack.c.0.s8 %v192
    %v194 = vlaneseq
    %v195 = vshrl.u32 %v194, 7
    %v196 = vsub.s32 %v193, %v195
    %v197 = vrot.slane %v175, %v196
    %v199 = vunpack.c.l.s4 1983009808
    %v200 = vunpack.c.0.s8 %v199
    %v201 = vlaneseq
    %v202 = vshrl.u32 %v201, 7
    %v203 = vsub.s32 %v200, %v202
    %v204 = vrot.slane %v176, %v203
    %v205 = vcombine.low %v183, %v197
    %v206 = vcombine.high %v183, %v197
    %v207 = vcombine.low %v190, %v204
    %v208 = vcombine.high %v190, %v204
    %v209 = vcombine.low %v158, %v160
    %v210 = vcombine.high %v158, %v160
    %v211 = vcombine.low %v162, %v164
    %v212 = vcombine.high %v162, %v164
    %v214 = vunpack.c.l.s4 1983009808
    %v215 = vunpack.c.0.s8 %v214
    %v216 = vlaneseq
    %v217 = vshrl.u32 %v216, 7
    %v218 = vsub.s32 %v215, %v217
    %v219 = vrot.slane %v209, %v218
    %v221 = vunpack.c.l.s4 1983009808
    %v222 = vunpack.c.0.s8 %v221
    %v223 = vlaneseq
    %v224 = vshrl.u32 %v223, 7
    %v225 = vsub.s32 %v222, %v224
    %v226 = vrot.slane %v210, %v225
    %v228 = vunpack.c.l.s4 1983009808
    %v229 = vunpack.c.0.s8 %v228
    %v230 = vlaneseq
    %v231 = vshrl.u32 %v230, 7
    %v232 = vsub.s32 %v229, %v231
    %v233 = vrot.slane %v211, %v232
    %v235 = vunpack.c.l.s4 1983009808
    %v236 = vunpack.c.0.s8 %v235
    %v237 = vlaneseq
    %v238 = vshrl.u32 %v237, 7
    %v239 = vsub.s32 %v236, %v238
    %v240 = vrot.slane %v212, %v239
    %v241 = vcombine.low %v219, %v233
    %v242 = vcombine.high %v219, %v233
    %v243 = vcombine.low %v226, %v240
    %v244 = vcombine.high %v226, %v240
    %v253 = vadd.f32 %v205, %v206
    %v254 = vadd.f32 %v253, %v207
    %v255 = vadd.f32 %v254, %v208
    %v256 = vadd.f32 %v255, %v241
    %v257 = vadd.f32 %v256, %v242
    %v258 = vadd.f32 %v257, %v243
    %v259 = vadd.f32 %v258, %v244
    %260 = vadd.xlane.f32.xlu0 %v259
    %v261 = vpop.xlane.xlu0 %260
    %v262 = vmul.f32 %v156, 0.0009765625
    %v263 = vmul.f32 %v261, 0.0009765625
    %v264 = vmul.f32 %v262, %v262
    %v265 = vsub.f32 %v263, %v264
    %v266 = vmax.f32 %v265, 0.0
    %v267 = vadd.f32 %v266, 1e-05
    %v268 = vrsqrt.pop %v267
    %v269 = vld [vmem:[#allocation5] sm:$0xff]
    %v270 = vld [vmem:[#allocation7] sm:$0xff]
    %v273 = vunpack.c.l.s4 269488144
    %v274 = vunpack.c.0.s8 %v273
    %v275 = vlaneseq
    %v276 = vshrl.u32 %v275, 7
    %v277 = vsub.s32 %v274, %v276
    %v278 = vrot.slane %v262, %v277
    %v280 = vunpack.c.l.s4 842150450
    %v281 = vunpack.c.0.s8 %v280
    %v282 = vlaneseq
    %v283 = vshrl.u32 %v282, 7
    %v284 = vsub.s32 %v281, %v283
    %v285 = vrot.slane %v262, %v284
    %v287 = vunpack.c.l.s4 1414812756
    %v288 = vunpack.c.0.s8 %v287
    %v289 = vlaneseq
    %v290 = vshrl.u32 %v289, 7
    %v291 = vsub.s32 %v288, %v290
    %v292 = vrot.slane %v262, %v291
    %v294 = vunpack.c.l.s4 1987475062
    %v295 = vunpack.c.0.s8 %v294
    %v296 = vlaneseq
    %v297 = vshrl.u32 %v296, 7
    %v298 = vsub.s32 %v295, %v297
    %v299 = vrot.slane %v262, %v298
    %v304 = vsub.f32 %v52, %v278
    %v305 = vsub.f32 %v53, %v278
    %v306 = vsub.f32 %v54, %v285
    %v307 = vsub.f32 %v55, %v285
    %v308 = vsub.f32 %v56, %v292
    %v309 = vsub.f32 %v57, %v292
    %v310 = vsub.f32 %v58, %v299
    %v311 = vsub.f32 %v59, %v299
    %v313 = vlaneseq
    %v314 = vshrl.u32 %v313, 7
    %v315 = vsub.s32 0, %v314
    %v316 = vrot.slane %v269, %v315
    %v317 = vlaneseq
    %v318 = vshrl.u32 %v317, 7
    %v319 = vsub.s32 1, %v318
    %v320 = vrot.slane %v269, %v319
    %v321 = vlaneseq
    %v322 = vshrl.u32 %v321, 7
    %v323 = vsub.s32 2, %v322
    %v324 = vrot.slane %v269, %v323
    %v325 = vlaneseq
    %v326 = vshrl.u32 %v325, 7
    %v327 = vsub.s32 3, %v326
    %v328 = vrot.slane %v269, %v327
    %v329 = vlaneseq
    %v330 = vshrl.u32 %v329, 7
    %v331 = vsub.s32 4, %v330
    %v332 = vrot.slane %v269, %v331
    %v333 = vlaneseq
    %v334 = vshrl.u32 %v333, 7
    %v335 = vsub.s32 5, %v334
    %v336 = vrot.slane %v269, %v335
    %v337 = vlaneseq
    %v338 = vshrl.u32 %v337, 7
    %v339 = vsub.s32 6, %v338
    %v340 = vrot.slane %v269, %v339
    %v341 = vlaneseq
    %v342 = vshrl.u32 %v341, 7
    %v343 = vsub.s32 7, %v342
    %v344 = vrot.slane %v269, %v343
    %v353 = vmul.f32 %v268, %v316
    %v354 = vmul.f32 %v268, %v320
    %v355 = vmul.f32 %v268, %v324
    %v356 = vmul.f32 %v268, %v328
    %v357 = vmul.f32 %v268, %v332
    %v358 = vmul.f32 %v268, %v336
    %v359 = vmul.f32 %v268, %v340
    %v360 = vmul.f32 %v268, %v344
    %v369 = vcombine.low %v353, %v354
    %v370 = vcombine.high %v353, %v354
    %v371 = vcombine.low %v355, %v356
    %v372 = vcombine.high %v355, %v356
    %v374 = vunpack.c.l.s4 1983009808
    %v375 = vunpack.c.0.s8 %v374
    %v376 = vlaneseq
    %v377 = vshrl.u32 %v376, 7
    %v378 = vsub.s32 %v375, %v377
    %v379 = vrot.slane %v369, %v378
    %v381 = vunpack.c.l.s4 1983009808
    %v382 = vunpack.c.0.s8 %v381
    %v383 = vlaneseq
    %v384 = vshrl.u32 %v383, 7
    %v385 = vsub.s32 %v382, %v384
    %v386 = vrot.slane %v370, %v385
    %v388 = vunpack.c.l.s4 1983009808
    %v389 = vunpack.c.0.s8 %v388
    %v390 = vlaneseq
    %v391 = vshrl.u32 %v390, 7
    %v392 = vsub.s32 %v389, %v391
    %v393 = vrot.slane %v371, %v392
    %v395 = vunpack.c.l.s4 1983009808
    %v396 = vunpack.c.0.s8 %v395
    %v397 = vlaneseq
    %v398 = vshrl.u32 %v397, 7
    %v399 = vsub.s32 %v396, %v398
    %v400 = vrot.slane %v372, %v399
    %v401 = vcombine.low %v379, %v393
    %v402 = vcombine.high %v379, %v393
    %v403 = vcombine.low %v386, %v400
    %v404 = vcombine.high %v386, %v400
    %v405 = vcombine.low %v357, %v358
    %v406 = vcombine.high %v357, %v358
    %v407 = vcombine.low %v359, %v360
    %v408 = vcombine.high %v359, %v360
    %v410 = vunpack.c.l.s4 1983009808
    %v411 = vunpack.c.0.s8 %v410
    %v412 = vlaneseq
    %v413 = vshrl.u32 %v412, 7
    %v414 = vsub.s32 %v411, %v413
    %v415 = vrot.slane %v405, %v414
    %v417 = vunpack.c.l.s4 1983009808
    %v418 = vunpack.c.0.s8 %v417
    %v419 = vlaneseq
    %v420 = vshrl.u32 %v419, 7
    %v421 = vsub.s32 %v418, %v420
    %v422 = vrot.slane %v406, %v421
    %v424 = vunpack.c.l.s4 1983009808
    %v425 = vunpack.c.0.s8 %v424
    %v426 = vlaneseq
    %v427 = vshrl.u32 %v426, 7
    %v428 = vsub.s32 %v425, %v427
    %v429 = vrot.slane %v407, %v428
    %v431 = vunpack.c.l.s4 1983009808
    %v432 = vunpack.c.0.s8 %v431
    %v433 = vlaneseq
    %v434 = vshrl.u32 %v433, 7
    %v435 = vsub.s32 %v432, %v434
    %v436 = vrot.slane %v408, %v435
    %v437 = vcombine.low %v415, %v429
    %v438 = vcombine.high %v415, %v429
    %v439 = vcombine.low %v422, %v436
    %v440 = vcombine.high %v422, %v436
    %v449 = vmul.f32 %v304, %v401
    %v450 = vmul.f32 %v305, %v437
    %v451 = vmul.f32 %v306, %v402
    %v452 = vmul.f32 %v307, %v438
    %v453 = vmul.f32 %v308, %v403
    %v454 = vmul.f32 %v309, %v439
    %v455 = vmul.f32 %v310, %v404
    %v456 = vmul.f32 %v311, %v440
    %v458 = vlaneseq
    %v459 = vshrl.u32 %v458, 7
    %v460 = vsub.s32 0, %v459
    %v461 = vrot.slane %v270, %v460
    %v462 = vlaneseq
    %v463 = vshrl.u32 %v462, 7
    %v464 = vsub.s32 1, %v463
    %v465 = vrot.slane %v270, %v464
    %v466 = vlaneseq
    %v467 = vshrl.u32 %v466, 7
    %v468 = vsub.s32 2, %v467
    %v469 = vrot.slane %v270, %v468
    %v470 = vlaneseq
    %v471 = vshrl.u32 %v470, 7
    %v472 = vsub.s32 3, %v471
    %v473 = vrot.slane %v270, %v472
    %v474 = vlaneseq
    %v475 = vshrl.u32 %v474, 7
    %v476 = vsub.s32 4, %v475
    %v477 = vrot.slane %v270, %v476
    %v478 = vlaneseq
    %v479 = vshrl.u32 %v478, 7
    %v480 = vsub.s32 5, %v479
    %v481 = vrot.slane %v270, %v480
    %v482 = vlaneseq
    %v483 = vshrl.u32 %v482, 7
    %v484 = vsub.s32 6, %v483
    %v485 = vrot.slane %v270, %v484
    %v486 = vlaneseq
    %v487 = vshrl.u32 %v486, 7
    %v488 = vsub.s32 7, %v487
    %v489 = vrot.slane %v270, %v488
    %v490 = vcombine.low %v461, %v465
    %v491 = vcombine.high %v461, %v465
    %v492 = vcombine.low %v469, %v473
    %v493 = vcombine.high %v469, %v473
    %v495 = vunpack.c.l.s4 1983009808
    %v496 = vunpack.c.0.s8 %v495
    %v497 = vlaneseq
    %v498 = vshrl.u32 %v497, 7
    %v499 = vsub.s32 %v496, %v498
    %v500 = vrot.slane %v490, %v499
    %v502 = vunpack.c.l.s4 1983009808
    %v503 = vunpack.c.0.s8 %v502
    %v504 = vlaneseq
    %v505 = vshrl.u32 %v504, 7
    %v506 = vsub.s32 %v503, %v505
    %v507 = vrot.slane %v491, %v506
    %v509 = vunpack.c.l.s4 1983009808
    %v510 = vunpack.c.0.s8 %v509
    %v511 = vlaneseq
    %v512 = vshrl.u32 %v511, 7
    %v513 = vsub.s32 %v510, %v512
    %v514 = vrot.slane %v492, %v513
    %v516 = vunpack.c.l.s4 1983009808
    %v517 = vunpack.c.0.s8 %v516
    %v518 = vlaneseq
    %v519 = vshrl.u32 %v518, 7
    %v520 = vsub.s32 %v517, %v519
    %v521 = vrot.slane %v493, %v520
    %v522 = vcombine.low %v500, %v514
    %v523 = vcombine.high %v500, %v514
    %v524 = vcombine.low %v507, %v521
    %v525 = vcombine.high %v507, %v521
    %v526 = vcombine.low %v477, %v481
    %v527 = vcombine.high %v477, %v481
    %v528 = vcombine.low %v485, %v489
    %v529 = vcombine.high %v485, %v489
    %v531 = vunpack.c.l.s4 1983009808
    %v532 = vunpack.c.0.s8 %v531
    %v533 = vlaneseq
    %v534 = vshrl.u32 %v533, 7
    %v535 = vsub.s32 %v532, %v534
    %v536 = vrot.slane %v526, %v535
    %v538 = vunpack.c.l.s4 1983009808
    %v539 = vunpack.c.0.s8 %v538
    %v540 = vlaneseq
    %v541 = vshrl.u32 %v540, 7
    %v542 = vsub.s32 %v539, %v541
    %v543 = vrot.slane %v527, %v542
    %v545 = vunpack.c.l.s4 1983009808
    %v546 = vunpack.c.0.s8 %v545
    %v547 = vlaneseq
    %v548 = vshrl.u32 %v547, 7
    %v549 = vsub.s32 %v546, %v548
    %v550 = vrot.slane %v528, %v549
    %v552 = vunpack.c.l.s4 1983009808
    %v553 = vunpack.c.0.s8 %v552
    %v554 = vlaneseq
    %v555 = vshrl.u32 %v554, 7
    %v556 = vsub.s32 %v553, %v555
    %v557 = vrot.slane %v529, %v556
    %v558 = vcombine.low %v536, %v550
    %v559 = vcombine.high %v536, %v550
    %v560 = vcombine.low %v543, %v557
    %v561 = vcombine.high %v543, %v557
    %v570 = vadd.f32 %v449, %v522
    %v571 = vadd.f32 %v450, %v558
    %v572 = vadd.f32 %v451, %v523
    %v573 = vadd.f32 %v452, %v559
    %v574 = vadd.f32 %v453, %v524
    %v575 = vadd.f32 %v454, %v560
    %v576 = vadd.f32 %v455, %v525
    %v577 = vadd.f32 %v456, %v561
    %578 = vst [vmem:[#allocation8] sm:$0xff] %v570
    %579 = vst [vmem:[#allocation8 + $0x8] sm:$0xff] %v571
    %580 = vst [vmem:[#allocation8 + $0x10] sm:$0xff] %v572
    %581 = vst [vmem:[#allocation8 + $0x18] sm:$0xff] %v573
    %582 = vst [vmem:[#allocation8 + $0x20] sm:$0xff] %v574
    %583 = vst [vmem:[#allocation8 + $0x28] sm:$0xff] %v575
    %584 = vst [vmem:[#allocation8 + $0x30] sm:$0xff] %v576
    %585 = vst [vmem:[#allocation8 + $0x38] sm:$0xff] %v577
    // Predicated region
    $region26: #{tpu_custom_call.1} parent=1 // pred_check
      _
    $region27: #{tpu_custom_call.1} parent=1 // pred_check_branch
      %587 = sbr.rel (0) target = $region29
    $region28: #{tpu_custom_call.1} parent=1 // pred_region
      %s589 = ssub.s32 1024, 256
      %590 = vsyncadd [#allocation4], %s589
      %s591 = sshll.u32 [#allocation8], 4
      %s592 = int_to_ptr.vmem [resolvable:$true] %s591
      %597 = dma.vmem_to_hbm [thread:$0]  %s592, 256, %s3, [#allocation4], 256, 256, 16
    $region29: #{tpu_custom_call.1} parent=1 // pred_fallthru
      _
    // Predicated region
    $region30: #{tpu_custom_call.1} parent=1 // pred_check
      _
    $region31: #{tpu_custom_call.1} parent=1 // pred_check_branch
      %599 = sbr.rel (0) target = $region33
    $region32: #{tpu_custom_call.1} parent=1 // pred_region
      %600 = dma.done [#allocation4], 1024
    $region33: #{tpu_custom_call.1} parent=1 // pred_fallthru
      _
    %601 = vsyncpa [#allocation3], 1
    %602 = vsyncpa [#allocation6], 1
    %603 = vsyncpa [#allocation4], 1

</llo_original>
